<compile_context>
chip_gen: v6e
topology: v6e:2x2x1
jax: 0.10.0
libtpu: 0.0.40
codegen_flags: <defaults>
</compile_context>

<pallas_src>
import functools

import jax
import jax.numpy as jnp
import numpy as np
from jax.experimental import pallas as pl
from jax.experimental.pallas import tpu as pltpu

NLABELS = 5
EPS = 0.001


def _mean_iou_kernel(logits_ref, target_ref, out_ref, *, nlabels, eps):
    # logits_ref block: (C, Bt, HW) f32 ; target_ref block: (Bt, HW) i32
    # out_ref block:    (Bt, 1) f32
    target = target_ref[...]                       # (Bt, HW) i32
    nclasses = logits_ref.shape[0]

    # Channel argmax (strict '>' => first-occurrence tie-break, like argmax).
    best = logits_ref[0]                           # (Bt, HW) f32
    pred = jnp.zeros_like(target)                  # (Bt, HW) i32
    for c in range(1, nclasses):
        cur = logits_ref[c]
        take = cur > best
        best = jnp.where(take, cur, best)
        pred = jnp.where(take, c, pred)

    # Per-class Jaccard: tp = |p & t|, fp = |p| - tp, fn = |t| - tp
    #   => denominator = |p| + |t| - tp
    acc = None
    for l in range(1, nlabels):
        p = pred == l
        t = target == l
        tp = jnp.sum((p & t).astype(jnp.float32), axis=1, keepdims=True)  # (Bt,1)
        sp = jnp.sum(p.astype(jnp.float32), axis=1, keepdims=True)
        st = jnp.sum(t.astype(jnp.float32), axis=1, keepdims=True)
        jcc = (tp + eps) / (sp + st - tp + eps)
        acc = jcc if acc is None else acc + jcc

    out_ref[...] = acc * (1.0 / (nlabels - 1))


def mean_iou(logits, target, *, nlabels=NLABELS, eps=EPS, max_batch_tile=8):
    B, C, H, W = logits.shape
    assert C == nlabels and nlabels > 1
    HW = H * W

    # Lane-dense layout (wrapper-side layout plumbing only):
    #   logits -> (C, B, HW)  so logits_ref[c] is a contiguous (Bt, HW) slab
    #   target -> (B, HW)
    logits_l = jnp.transpose(logits.reshape(B, C, HW), (1, 0, 2))
    target_l = target.reshape(B, HW).astype(jnp.int32)

    # Batch-tile: several images per grid step.  The batch block dim must be a
    # multiple of 8 or equal the (padded) full batch dim.
    if B <= max_batch_tile:
        Bt, Bp = B, B
    else:
        Bt = 8
        Bp = ((B + Bt - 1) // Bt) * Bt
    if Bp != B:
        logits_l = jnp.pad(logits_l, ((0, 0), (0, Bp - B), (0, 0)))
        target_l = jnp.pad(target_l, ((0, Bp - B), (0, 0)))

    # Scoped-VMEM limit sized to ~2x (double-buffered) blocks + headroom.
    block_bytes = (C * Bt * HW + Bt * HW + Bt) * 4
    vmem_limit = int(min(max(2 * block_bytes + (4 << 20), 16 << 20), 112 << 20))

    kernel = functools.partial(_mean_iou_kernel, nlabels=nlabels, eps=float(eps))
    out = pl.pallas_call(
        kernel,
        out_shape=jax.ShapeDtypeStruct((Bp, 1), jnp.float32),
        grid=(Bp // Bt,),
        in_specs=[
            pl.BlockSpec((C, Bt, HW), lambda g: (0, g, 0)),
            pl.BlockSpec((Bt, HW), lambda g: (g, 0)),
        ],
        out_specs=pl.BlockSpec((Bt, 1), lambda g: (g, 0)),
        compiler_params=pltpu.CompilerParams(
            dimension_semantics=("parallel",),
            vmem_limit_bytes=vmem_limit,
        ),
    )(logits_l, target_l)
    return out[:B, 0]


def mean_iou_ref(logits, target, *, nlabels=NLABELS, eps=EPS):
    # Pure-JAX reference matching the PyTorch module exactly.
    pred = jnp.argmax(logits, axis=1)
    jccs = []
    for l in range(1, nlabels):
        _pred = (pred == l).astype(jnp.float32)
        _label = (target == l).astype(jnp.float32)
        _cm = _pred * 2 - _label
        dims = (1, 2)
        tp = jnp.sum((_cm == 1).astype(jnp.float32), axis=dims)
        fp = jnp.sum((_cm == 2).astype(jnp.float32), axis=dims)
        fn = jnp.sum((_cm == -1).astype(jnp.float32), axis=dims)
        jccs.append(((tp + eps) / (fn + fp + tp + eps))[:, None])
    return jnp.concatenate(jccs, axis=1).mean(axis=1)


if __name__ == "__main__":
    key = jax.random.PRNGKey(0)
    k1, k2 = jax.random.split(key)
    B, C, H, W = 2, NLABELS, 16, 16
    logits = jax.random.normal(k1, (B, C, H, W), dtype=jnp.float32)
    target = jax.random.randint(k2, (B, H, W), 0, NLABELS, dtype=jnp.int32)

    out = mean_iou(logits, target)
    jax.block_until_ready(out)

    ref = mean_iou_ref(logits, target)
    np.testing.assert_allclose(np.asarray(out), np.asarray(ref), rtol=1e-5, atol=1e-5)

    print("KERNEL_OK")
</pallas_src>

<mosaic_0001>
module attributes {stable_mosaic.version = 11 : i64} {
  func.func @_mean_iou_kernel(%arg0: i32, %arg1: memref<5x2x256xf32, #tpu.memory_space<vmem>>, %arg2: memref<2x256xi32, #tpu.memory_space<vmem>>, %arg3: memref<2x1xf32, #tpu.memory_space<vmem>>) attributes {dimension_semantics = [#tpu.dimension_semantics<parallel>], iteration_bounds = array<i64: 1>, scalar_prefetch = 0 : i64, scratch_operands = 0 : i64, tpu.core_type = #tpu.core_type<tc>, window_params = [{transform_indices = @transform_0, window_bounds = array<i64: 5, 2, 256>}, {transform_indices = @transform_1, window_bounds = array<i64: 2, 256>}, {transform_indices = @transform_2, window_bounds = array<i64: 2, 1>}]} {
    %c0 = arith.constant 0 : index
    %c0_0 = arith.constant 0 : index
    %0 = vector.load %arg2[%c0, %c0_0] : memref<2x256xi32, #tpu.memory_space<vmem>>, vector<2x256xi32>
    %c0_1 = arith.constant 0 : index
    %c0_2 = arith.constant 0 : index
    %c0_3 = arith.constant 0 : index
    %1 = vector.load %arg1[%c0_1, %c0_2, %c0_3] : memref<5x2x256xf32, #tpu.memory_space<vmem>>, vector<1x2x256xf32>
    %2 = vector.shape_cast %1 : vector<1x2x256xf32> to vector<2x256xf32>
    %c0_i32 = arith.constant 0 : i32
    %3 = vector.broadcast %c0_i32 : i32 to vector<2x256xi32>
    %c1 = arith.constant 1 : index
    %c0_4 = arith.constant 0 : index
    %c0_5 = arith.constant 0 : index
    %4 = vector.load %arg1[%c1, %c0_4, %c0_5] : memref<5x2x256xf32, #tpu.memory_space<vmem>>, vector<1x2x256xf32>
    %5 = vector.shape_cast %4 : vector<1x2x256xf32> to vector<2x256xf32>
    %6 = arith.cmpf ogt, %5, %2 : vector<2x256xf32>
    %7 = arith.select %6, %5, %2 : vector<2x256xi1>, vector<2x256xf32>
    %c1_i32 = arith.constant 1 : i32
    %8 = vector.broadcast %c1_i32 : i32 to vector<2x256xi32>
    %9 = arith.select %6, %8, %3 : vector<2x256xi1>, vector<2x256xi32>
    %c2 = arith.constant 2 : index
    %c0_6 = arith.constant 0 : index
    %c0_7 = arith.constant 0 : index
    %10 = vector.load %arg1[%c2, %c0_6, %c0_7] : memref<5x2x256xf32, #tpu.memory_space<vmem>>, vector<1x2x256xf32>
    %11 = vector.shape_cast %10 : vector<1x2x256xf32> to vector<2x256xf32>
    %12 = arith.cmpf ogt, %11, %7 : vector<2x256xf32>
    %13 = arith.select %12, %11, %7 : vector<2x256xi1>, vector<2x256xf32>
    %c2_i32 = arith.constant 2 : i32
    %14 = vector.broadcast %c2_i32 : i32 to vector<2x256xi32>
    %15 = arith.select %12, %14, %9 : vector<2x256xi1>, vector<2x256xi32>
    %c3 = arith.constant 3 : index
    %c0_8 = arith.constant 0 : index
    %c0_9 = arith.constant 0 : index
    %16 = vector.load %arg1[%c3, %c0_8, %c0_9] : memref<5x2x256xf32, #tpu.memory_space<vmem>>, vector<1x2x256xf32>
    %17 = vector.shape_cast %16 : vector<1x2x256xf32> to vector<2x256xf32>
    %18 = arith.cmpf ogt, %17, %13 : vector<2x256xf32>
    %19 = arith.select %18, %17, %13 : vector<2x256xi1>, vector<2x256xf32>
    %c3_i32 = arith.constant 3 : i32
    %20 = vector.broadcast %c3_i32 : i32 to vector<2x256xi32>
    %21 = arith.select %18, %20, %15 : vector<2x256xi1>, vector<2x256xi32>
    %c4 = arith.constant 4 : index
    %c0_10 = arith.constant 0 : index
    %c0_11 = arith.constant 0 : index
    %22 = vector.load %arg1[%c4, %c0_10, %c0_11] : memref<5x2x256xf32, #tpu.memory_space<vmem>>, vector<1x2x256xf32>
    %23 = vector.shape_cast %22 : vector<1x2x256xf32> to vector<2x256xf32>
    %24 = arith.cmpf ogt, %23, %19 : vector<2x256xf32>
    %c4_i32 = arith.constant 4 : i32
    %25 = vector.broadcast %c4_i32 : i32 to vector<2x256xi32>
    %26 = arith.select %24, %25, %21 : vector<2x256xi1>, vector<2x256xi32>
    %c1_i32_12 = arith.constant 1 : i32
    %27 = vector.broadcast %c1_i32_12 : i32 to vector<2x256xi32>
    %28 = arith.cmpi eq, %26, %27 : vector<2x256xi32>
    %c1_i32_13 = arith.constant 1 : i32
    %29 = vector.broadcast %c1_i32_13 : i32 to vector<2x256xi32>
    %30 = arith.cmpi eq, %0, %29 : vector<2x256xi32>
    %31 = arith.andi %28, %30 : vector<2x256xi1>
    %32 = arith.extui %31 : vector<2x256xi1> to vector<2x256xi32>
    %33 = arith.sitofp %32 : vector<2x256xi32> to vector<2x256xf32>
    %cst = arith.constant dense<0.000000e+00> : vector<2xf32>
    %34 = vector.multi_reduction <add>, %33, %cst [1] : vector<2x256xf32> to vector<2xf32>
    %35 = vector.shape_cast %34 : vector<2xf32> to vector<2x1xf32>
    %36 = arith.extui %28 : vector<2x256xi1> to vector<2x256xi32>
    %37 = arith.sitofp %36 : vector<2x256xi32> to vector<2x256xf32>
    %cst_14 = arith.constant dense<0.000000e+00> : vector<2xf32>
    %38 = vector.multi_reduction <add>, %37, %cst_14 [1] : vector<2x256xf32> to vector<2xf32>
    %39 = vector.shape_cast %38 : vector<2xf32> to vector<2x1xf32>
    %40 = arith.extui %30 : vector<2x256xi1> to vector<2x256xi32>
    %41 = arith.sitofp %40 : vector<2x256xi32> to vector<2x256xf32>
    %cst_15 = arith.constant dense<0.000000e+00> : vector<2xf32>
    %42 = vector.multi_reduction <add>, %41, %cst_15 [1] : vector<2x256xf32> to vector<2xf32>
    %43 = vector.shape_cast %42 : vector<2xf32> to vector<2x1xf32>
    %cst_16 = arith.constant 1.000000e-03 : f32
    %44 = vector.broadcast %cst_16 : f32 to vector<2x1xf32>
    %45 = arith.addf %35, %44 : vector<2x1xf32>
    %46 = arith.addf %39, %43 : vector<2x1xf32>
    %47 = arith.subf %46, %35 : vector<2x1xf32>
    %cst_17 = arith.constant 1.000000e-03 : f32
    %48 = vector.broadcast %cst_17 : f32 to vector<2x1xf32>
    %49 = arith.addf %47, %48 : vector<2x1xf32>
    %50 = arith.divf %45, %49 : vector<2x1xf32>
    %c2_i32_18 = arith.constant 2 : i32
    %51 = vector.broadcast %c2_i32_18 : i32 to vector<2x256xi32>
    %52 = arith.cmpi eq, %26, %51 : vector<2x256xi32>
    %c2_i32_19 = arith.constant 2 : i32
    %53 = vector.broadcast %c2_i32_19 : i32 to vector<2x256xi32>
    %54 = arith.cmpi eq, %0, %53 : vector<2x256xi32>
    %55 = arith.andi %52, %54 : vector<2x256xi1>
    %56 = arith.extui %55 : vector<2x256xi1> to vector<2x256xi32>
    %57 = arith.sitofp %56 : vector<2x256xi32> to vector<2x256xf32>
    %cst_20 = arith.constant dense<0.000000e+00> : vector<2xf32>
    %58 = vector.multi_reduction <add>, %57, %cst_20 [1] : vector<2x256xf32> to vector<2xf32>
    %59 = vector.shape_cast %58 : vector<2xf32> to vector<2x1xf32>
    %60 = arith.extui %52 : vector<2x256xi1> to vector<2x256xi32>
    %61 = arith.sitofp %60 : vector<2x256xi32> to vector<2x256xf32>
    %cst_21 = arith.constant dense<0.000000e+00> : vector<2xf32>
    %62 = vector.multi_reduction <add>, %61, %cst_21 [1] : vector<2x256xf32> to vector<2xf32>
    %63 = vector.shape_cast %62 : vector<2xf32> to vector<2x1xf32>
    %64 = arith.extui %54 : vector<2x256xi1> to vector<2x256xi32>
    %65 = arith.sitofp %64 : vector<2x256xi32> to vector<2x256xf32>
    %cst_22 = arith.constant dense<0.000000e+00> : vector<2xf32>
    %66 = vector.multi_reduction <add>, %65, %cst_22 [1] : vector<2x256xf32> to vector<2xf32>
    %67 = vector.shape_cast %66 : vector<2xf32> to vector<2x1xf32>
    %cst_23 = arith.constant 1.000000e-03 : f32
    %68 = vector.broadcast %cst_23 : f32 to vector<2x1xf32>
    %69 = arith.addf %59, %68 : vector<2x1xf32>
    %70 = arith.addf %63, %67 : vector<2x1xf32>
    %71 = arith.subf %70, %59 : vector<2x1xf32>
    %cst_24 = arith.constant 1.000000e-03 : f32
    %72 = vector.broadcast %cst_24 : f32 to vector<2x1xf32>
    %73 = arith.addf %71, %72 : vector<2x1xf32>
    %74 = arith.divf %69, %73 : vector<2x1xf32>
    %75 = arith.addf %50, %74 : vector<2x1xf32>
    %c3_i32_25 = arith.constant 3 : i32
    %76 = vector.broadcast %c3_i32_25 : i32 to vector<2x256xi32>
    %77 = arith.cmpi eq, %26, %76 : vector<2x256xi32>
    %c3_i32_26 = arith.constant 3 : i32
    %78 = vector.broadcast %c3_i32_26 : i32 to vector<2x256xi32>
    %79 = arith.cmpi eq, %0, %78 : vector<2x256xi32>
    %80 = arith.andi %77, %79 : vector<2x256xi1>
    %81 = arith.extui %80 : vector<2x256xi1> to vector<2x256xi32>
    %82 = arith.sitofp %81 : vector<2x256xi32> to vector<2x256xf32>
    %cst_27 = arith.constant dense<0.000000e+00> : vector<2xf32>
    %83 = vector.multi_reduction <add>, %82, %cst_27 [1] : vector<2x256xf32> to vector<2xf32>
    %84 = vector.shape_cast %83 : vector<2xf32> to vector<2x1xf32>
    %85 = arith.extui %77 : vector<2x256xi1> to vector<2x256xi32>
    %86 = arith.sitofp %85 : vector<2x256xi32> to vector<2x256xf32>
    %cst_28 = arith.constant dense<0.000000e+00> : vector<2xf32>
    %87 = vector.multi_reduction <add>, %86, %cst_28 [1] : vector<2x256xf32> to vector<2xf32>
    %88 = vector.shape_cast %87 : vector<2xf32> to vector<2x1xf32>
    %89 = arith.extui %79 : vector<2x256xi1> to vector<2x256xi32>
    %90 = arith.sitofp %89 : vector<2x256xi32> to vector<2x256xf32>
    %cst_29 = arith.constant dense<0.000000e+00> : vector<2xf32>
    %91 = vector.multi_reduction <add>, %90, %cst_29 [1] : vector<2x256xf32> to vector<2xf32>
    %92 = vector.shape_cast %91 : vector<2xf32> to vector<2x1xf32>
    %cst_30 = arith.constant 1.000000e-03 : f32
    %93 = vector.broadcast %cst_30 : f32 to vector<2x1xf32>
    %94 = arith.addf %84, %93 : vector<2x1xf32>
    %95 = arith.addf %88, %92 : vector<2x1xf32>
    %96 = arith.subf %95, %84 : vector<2x1xf32>
    %cst_31 = arith.constant 1.000000e-03 : f32
    %97 = vector.broadcast %cst_31 : f32 to vector<2x1xf32>
    %98 = arith.addf %96, %97 : vector<2x1xf32>
    %99 = arith.divf %94, %98 : vector<2x1xf32>
    %100 = arith.addf %75, %99 : vector<2x1xf32>
    %c4_i32_32 = arith.constant 4 : i32
    %101 = vector.broadcast %c4_i32_32 : i32 to vector<2x256xi32>
    %102 = arith.cmpi eq, %26, %101 : vector<2x256xi32>
    %c4_i32_33 = arith.constant 4 : i32
    %103 = vector.broadcast %c4_i32_33 : i32 to vector<2x256xi32>
    %104 = arith.cmpi eq, %0, %103 : vector<2x256xi32>
    %105 = arith.andi %102, %104 : vector<2x256xi1>
    %106 = arith.extui %105 : vector<2x256xi1> to vector<2x256xi32>
    %107 = arith.sitofp %106 : vector<2x256xi32> to vector<2x256xf32>
    %cst_34 = arith.constant dense<0.000000e+00> : vector<2xf32>
    %108 = vector.multi_reduction <add>, %107, %cst_34 [1] : vector<2x256xf32> to vector<2xf32>
    %109 = vector.shape_cast %108 : vector<2xf32> to vector<2x1xf32>
    %110 = arith.extui %102 : vector<2x256xi1> to vector<2x256xi32>
    %111 = arith.sitofp %110 : vector<2x256xi32> to vector<2x256xf32>
    %cst_35 = arith.constant dense<0.000000e+00> : vector<2xf32>
    %112 = vector.multi_reduction <add>, %111, %cst_35 [1] : vector<2x256xf32> to vector<2xf32>
    %113 = vector.shape_cast %112 : vector<2xf32> to vector<2x1xf32>
    %114 = arith.extui %104 : vector<2x256xi1> to vector<2x256xi32>
    %115 = arith.sitofp %114 : vector<2x256xi32> to vector<2x256xf32>
    %cst_36 = arith.constant dense<0.000000e+00> : vector<2xf32>
    %116 = vector.multi_reduction <add>, %115, %cst_36 [1] : vector<2x256xf32> to vector<2xf32>
    %117 = vector.shape_cast %116 : vector<2xf32> to vector<2x1xf32>
    %cst_37 = arith.constant 1.000000e-03 : f32
    %118 = vector.broadcast %cst_37 : f32 to vector<2x1xf32>
    %119 = arith.addf %109, %118 : vector<2x1xf32>
    %120 = arith.addf %113, %117 : vector<2x1xf32>
    %121 = arith.subf %120, %109 : vector<2x1xf32>
    %cst_38 = arith.constant 1.000000e-03 : f32
    %122 = vector.broadcast %cst_38 : f32 to vector<2x1xf32>
    %123 = arith.addf %121, %122 : vector<2x1xf32>
    %124 = arith.divf %119, %123 : vector<2x1xf32>
    %125 = arith.addf %100, %124 : vector<2x1xf32>
    %cst_39 = arith.constant 2.500000e-01 : f32
    %126 = vector.broadcast %cst_39 : f32 to vector<2x1xf32>
    %127 = arith.mulf %125, %126 : vector<2x1xf32>
    %c0_40 = arith.constant 0 : index
    %c0_41 = arith.constant 0 : index
    %128 = vector.load %arg3[%c0_40, %c0_41] : memref<2x1xf32, #tpu.memory_space<vmem>>, vector<2x1xf32>
    tpu.vector_store %arg3[%c0_40, %c0_41], %127 {strides = array<i32>} : memref<2x1xf32, #tpu.memory_space<vmem>>, vector<2x1xf32>,
    return
  }
  func.func @transform_0(%arg0: i32) -> (i32, i32, i32) {
    %c0_i32 = arith.constant 0 : i32
    %c0_i32_0 = arith.constant 0 : i32
    %c0_i32_1 = arith.constant 0 : i32
    return %c0_i32, %arg0, %c0_i32_0 : i32, i32, i32
  }
  func.func @transform_1(%arg0: i32) -> (i32, i32) {
    %c0_i32 = arith.constant 0 : i32
    %c0_i32_0 = arith.constant 0 : i32
    return %arg0, %c0_i32 : i32, i32
  }
  func.func @transform_2(%arg0: i32) -> (i32, i32) {
    %c0_i32 = arith.constant 0 : i32
    %c0_i32_0 = arith.constant 0 : i32
    return %arg0, %c0_i32 : i32, i32
  }
}

</mosaic_0001>

<llo_original>
// kernel: tpu_custom_call.1
$region0: #{tpu_custom_call.1}
  #allocation0 [shape = 'u32[]', space=smem, size = 0x4, offset = 0x4, fixed_abs, tag = 'smem constant byte address 0x4 - core index']
  #allocation1 [shape = 'u32[144,128]{1,0:T(1,128)}', space=vmem, size = 0x12000, scoped, tag = 'internal scratch']
  %s0 = inlined_call_operand.hbm [shape: f32[5,2,256], index: 0, kind: input, shape index: {}]
  %s1 = inlined_call_operand.hbm [shape: s32[2,256], index: 1, kind: input, shape index: {}]
  %s2 = inlined_call_operand.vmem [shape: f32[2,1], index: 2, kind: output, shape index: {}]
  %s3 = sld [smem:[#allocation0]]
  $region26: #{tpu_custom_call.1} parent=0
    _
  %s5 = ssub.s32 1, %s3
  %s6 = scalar_select 0, %s5, %s3
  $region1: #{tpu_custom_call.1} parent=0
    #allocation2 [shape = 'u8[10240]{0}', space=vmem, size = 0x2800, scoped, tag = 'input window, operand 0, single buffered']
    #allocation3 [shape = 's32[1]{0}', space=sflag, size = 0x4, scoped, tag = 'scoped memory for tpu_custom_call.1']
    #allocation4 [shape = 'u8[2048]{0}', space=vmem, size = 0x800, scoped, tag = 'input window, operand 1, single buffered']
    #allocation5 [shape = 's32[1]{0}', space=sflag, size = 0x4, scoped, tag = 'scoped memory for tpu_custom_call.1']
    %7 = vsyncpa [#allocation3], 0
    %8 = vsyncpa [#allocation5], 0
    // Predicated region
    $region2: #{tpu_custom_call.1} parent=1 // pred_check
      _
    $region3: #{tpu_custom_call.1} parent=1 // pred_check_branch
      %10 = sbr.rel (0) target = $region5
    $region4: #{tpu_custom_call.1} parent=1 // pred_region
      %s12 = ssub.s32 320, 320
      %13 = vsyncadd [#allocation3], %s12
      %s14 = sshll.u32 [#allocation2], 4
      %s15 = int_to_ptr.vmem [resolvable:$true] %s14
      %20 = dma.hbm_to_vmem [thread:$0]  %s0, 320, %s15, [#allocation3], 64, 64, 4
    $region5: #{tpu_custom_call.1} parent=1 // pred_fallthru
      _
    // Predicated region
    $region6: #{tpu_custom_call.1} parent=1 // pred_check
      _
    $region7: #{tpu_custom_call.1} parent=1 // pred_check_branch
      %22 = sbr.rel (0) target = $region9
    $region8: #{tpu_custom_call.1} parent=1 // pred_region
      %s24 = ssub.s32 64, 64
      %25 = vsyncadd [#allocation5], %s24
      %s27 = sshll.u32 [#allocation4], 4
      %s28 = int_to_ptr.vmem [resolvable:$true] %s27
      %30 = dma.hbm_to_vmem [thread:$0]  %s1, 64, %s28, [#allocation5]
    $region9: #{tpu_custom_call.1} parent=1 // pred_fallthru
      _
    // Predicated region
    $region10: #{tpu_custom_call.1} parent=1 // pred_check
      _
    $region11: #{tpu_custom_call.1} parent=1 // pred_check_branch
      %32 = sbr.rel (0) target = $region13
    $region12: #{tpu_custom_call.1} parent=1 // pred_region
      %33 = dma.done [#allocation3], 320
    $region13: #{tpu_custom_call.1} parent=1 // pred_fallthru
      _
    // Predicated region
    $region14: #{tpu_custom_call.1} parent=1 // pred_check
      _
    $region15: #{tpu_custom_call.1} parent=1 // pred_check_branch
      %35 = sbr.rel (0) target = $region17
    $region16: #{tpu_custom_call.1} parent=1 // pred_region
      %36 = dma.done [#allocation5], 64
    $region17: #{tpu_custom_call.1} parent=1 // pred_fallthru
      _
    %v37 = vld [vmem:[#allocation4] sm:$0xf]
    %v38 = vld [vmem:[#allocation2] sm:$0xf]
    %s39 = scalar_lea.vmem [#allocation2], 4
    %v40 = vld [vmem:[%s39] sm:$0xf]
    %vm41 = vcmp.gt.f32.partialorder %v40, %v38
    %v42 = vsel %vm41, %v40, %v38
    %v43 = vsel %vm41, 1, 0
    %s44 = scalar_lea.vmem [#allocation2], 8
    %v45 = vld [vmem:[%s44] sm:$0xf]
    %vm46 = vcmp.gt.f32.partialorder %v45, %v42
    %v47 = vsel %vm46, %v45, %v42
    %v48 = vsel %vm46, 2, %v43
    %s49 = scalar_lea.vmem [#allocation2], 12
    %v50 = vld [vmem:[%s49] sm:$0xf]
    %vm51 = vcmp.gt.f32.partialorder %v50, %v47
    %v52 = vsel %vm51, %v50, %v47
    %v53 = vsel %vm51, 3, %v48
    %s54 = scalar_lea.vmem [#allocation2], 16
    %v55 = vld [vmem:[%s54] sm:$0xf]
    %vm56 = vcmp.gt.f32.partialorder %v55, %v52
    %v57 = vsel %vm56, 4, %v53
    %vm58 = vcmp.eq.s32.totalorder %v57, 1
    %vm59 = vcmp.eq.s32.totalorder %v37, 1
    %vm60 = vmand %vm58, %vm59
    %v61 = vsel %vm60, 1, 0
    %v62 = vcvt.s32.f32 %v61
    %v65 = vunpack.c.l.s4 1983009808
    %v66 = vunpack.c.0.s8 %v65
    %v67 = vlaneseq
    %v68 = vshrl.u32 %v67, 7
    %v69 = vsub.s32 %v66, %v68
    %v70 = vrot.slane %v62, %v69
    %v71 = vcombine.high %v70, %v70
    %vm74 = vcmask 1041408
    %v75 = vsel %vm74, %v70, 0.0
    %v76 = vsel %vm74, %v71, 0.0
    %v77 = vadd.f32 %v75, %v76
    %78 = vadd.xlane.f32.xlu0 %v77
    %v79 = vpop.xlane.xlu0 %78
    %v80 = vsel %vm58, 1, 0
    %v81 = vcvt.s32.f32 %v80
    %v84 = vunpack.c.l.s4 1983009808
    %v85 = vunpack.c.0.s8 %v84
    %v86 = vlaneseq
    %v87 = vshrl.u32 %v86, 7
    %v88 = vsub.s32 %v85, %v87
    %v89 = vrot.slane %v81, %v88
    %v90 = vcombine.high %v89, %v89
    %v93 = vsel %vm74, %v89, 0.0
    %v94 = vsel %vm74, %v90, 0.0
    %v95 = vadd.f32 %v93, %v94
    %96 = vadd.xlane.f32.xlu0 %v95
    %v97 = vpop.xlane.xlu0 %96
    %v98 = vsel %vm59, 1, 0
    %v99 = vcvt.s32.f32 %v98
    %v102 = vunpack.c.l.s4 1983009808
    %v103 = vunpack.c.0.s8 %v102
    %v104 = vlaneseq
    %v105 = vshrl.u32 %v104, 7
    %v106 = vsub.s32 %v103, %v105
    %v107 = vrot.slane %v99, %v106
    %v108 = vcombine.high %v107, %v107
    %v111 = vsel %vm74, %v107, 0.0
    %v112 = vsel %vm74, %v108, 0.0
    %v113 = vadd.f32 %v111, %v112
    %114 = vadd.xlane.f32.xlu0 %v113
    %v115 = vpop.xlane.xlu0 %114
    %v116 = vadd.f32 %v79, 0.001
    %v117 = vadd.f32 %v97, %v115
    %v118 = vsub.f32 %v117, %v79
    %v119 = vadd.f32 %v118, 0.001
    %v120 = vrcp.pop %v119
    %v121 = vmul.f32 %v116, %v120
    %vm122 = vcmp.eq.s32.totalorder %v57, 2
    %vm123 = vcmp.eq.s32.totalorder %v37, 2
    %vm124 = vmand %vm122, %vm123
    %v125 = vsel %vm124, 1, 0
    %v126 = vcvt.s32.f32 %v125
    %v129 = vunpack.c.l.s4 1983009808
    %v130 = vunpack.c.0.s8 %v129
    %v131 = vlaneseq
    %v132 = vshrl.u32 %v131, 7
    %v133 = vsub.s32 %v130, %v132
    %v134 = vrot.slane %v126, %v133
    %v135 = vcombine.high %v134, %v134
    %v138 = vsel %vm74, %v134, 0.0
    %v139 = vsel %vm74, %v135, 0.0
    %v140 = vadd.f32 %v138, %v139
    %141 = vadd.xlane.f32.xlu0 %v140
    %v142 = vpop.xlane.xlu0 %141
    %v143 = vsel %vm122, 1, 0
    %v144 = vcvt.s32.f32 %v143
    %v147 = vunpack.c.l.s4 1983009808
    %v148 = vunpack.c.0.s8 %v147
    %v149 = vlaneseq
    %v150 = vshrl.u32 %v149, 7
    %v151 = vsub.s32 %v148, %v150
    %v152 = vrot.slane %v144, %v151
    %v153 = vcombine.high %v152, %v152
    %v156 = vsel %vm74, %v152, 0.0
    %v157 = vsel %vm74, %v153, 0.0
    %v158 = vadd.f32 %v156, %v157
    %159 = vadd.xlane.f32.xlu0 %v158
    %v160 = vpop.xlane.xlu0 %159
    %v161 = vsel %vm123, 1, 0
    %v162 = vcvt.s32.f32 %v161
    %v165 = vunpack.c.l.s4 1983009808
    %v166 = vunpack.c.0.s8 %v165
    %v167 = vlaneseq
    %v168 = vshrl.u32 %v167, 7
    %v169 = vsub.s32 %v166, %v168
    %v170 = vrot.slane %v162, %v169
    %v171 = vcombine.high %v170, %v170
    %v174 = vsel %vm74, %v170, 0.0
    %v175 = vsel %vm74, %v171, 0.0
    %v176 = vadd.f32 %v174, %v175
    %177 = vadd.xlane.f32.xlu0 %v176
    %v178 = vpop.xlane.xlu0 %177
    %v179 = vadd.f32 %v142, 0.001
    %v180 = vadd.f32 %v160, %v178
    %v181 = vsub.f32 %v180, %v142
    %v182 = vadd.f32 %v181, 0.001
    %v183 = vrcp.pop %v182
    %v184 = vmul.f32 %v179, %v183
    %v185 = vadd.f32 %v121, %v184
    %vm186 = vcmp.eq.s32.totalorder %v57, 3
    %vm187 = vcmp.eq.s32.totalorder %v37, 3
    %vm188 = vmand %vm186, %vm187
    %v189 = vsel %vm188, 1, 0
    %v190 = vcvt.s32.f32 %v189
    %v193 = vunpack.c.l.s4 1983009808
    %v194 = vunpack.c.0.s8 %v193
    %v195 = vlaneseq
    %v196 = vshrl.u32 %v195, 7
    %v197 = vsub.s32 %v194, %v196
    %v198 = vrot.slane %v190, %v197
    %v199 = vcombine.high %v198, %v198
    %v202 = vsel %vm74, %v198, 0.0
    %v203 = vsel %vm74, %v199, 0.0
    %v204 = vadd.f32 %v202, %v203
    %205 = vadd.xlane.f32.xlu0 %v204
    %v206 = vpop.xlane.xlu0 %205
    %v207 = vsel %vm186, 1, 0
    %v208 = vcvt.s32.f32 %v207
    %v211 = vunpack.c.l.s4 1983009808
    %v212 = vunpack.c.0.s8 %v211
    %v213 = vlaneseq
    %v214 = vshrl.u32 %v213, 7
    %v215 = vsub.s32 %v212, %v214
    %v216 = vrot.slane %v208, %v215
    %v217 = vcombine.high %v216, %v216
    %v220 = vsel %vm74, %v216, 0.0
    %v221 = vsel %vm74, %v217, 0.0
    %v222 = vadd.f32 %v220, %v221
    %223 = vadd.xlane.f32.xlu0 %v222
    %v224 = vpop.xlane.xlu0 %223
    %v225 = vsel %vm187, 1, 0
    %v226 = vcvt.s32.f32 %v225
    %v229 = vunpack.c.l.s4 1983009808
    %v230 = vunpack.c.0.s8 %v229
    %v231 = vlaneseq
    %v232 = vshrl.u32 %v231, 7
    %v233 = vsub.s32 %v230, %v232
    %v234 = vrot.slane %v226, %v233
    %v235 = vcombine.high %v234, %v234
    %v238 = vsel %vm74, %v234, 0.0
    %v239 = vsel %vm74, %v235, 0.0
    %v240 = vadd.f32 %v238, %v239
    %241 = vadd.xlane.f32.xlu0 %v240
    %v242 = vpop.xlane.xlu0 %241
    %v243 = vadd.f32 %v206, 0.001
    %v244 = vadd.f32 %v224, %v242
    %v245 = vsub.f32 %v244, %v206
    %v246 = vadd.f32 %v245, 0.001
    %v247 = vrcp.pop %v246
    %v248 = vmul.f32 %v243, %v247
    %v249 = vadd.f32 %v185, %v248
    %vm250 = vcmp.eq.s32.totalorder %v57, 4
    %vm251 = vcmp.eq.s32.totalorder %v37, 4
    %vm252 = vmand %vm250, %vm251
    %v253 = vsel %vm252, 1, 0
    %v254 = vcvt.s32.f32 %v253
    %v257 = vunpack.c.l.s4 1983009808
    %v258 = vunpack.c.0.s8 %v257
    %v259 = vlaneseq
    %v260 = vshrl.u32 %v259, 7
    %v261 = vsub.s32 %v258, %v260
    %v262 = vrot.slane %v254, %v261
    %v263 = vcombine.high %v262, %v262
    %v266 = vsel %vm74, %v262, 0.0
    %v267 = vsel %vm74, %v263, 0.0
    %v268 = vadd.f32 %v266, %v267
    %269 = vadd.xlane.f32.xlu0 %v268
    %v270 = vpop.xlane.xlu0 %269
    %v271 = vsel %vm250, 1, 0
    %v272 = vcvt.s32.f32 %v271
    %v275 = vunpack.c.l.s4 1983009808
    %v276 = vunpack.c.0.s8 %v275
    %v277 = vlaneseq
    %v278 = vshrl.u32 %v277, 7
    %v279 = vsub.s32 %v276, %v278
    %v280 = vrot.slane %v272, %v279
    %v281 = vcombine.high %v280, %v280
    %v284 = vsel %vm74, %v280, 0.0
    %v285 = vsel %vm74, %v281, 0.0
    %v286 = vadd.f32 %v284, %v285
    %287 = vadd.xlane.f32.xlu0 %v286
    %v288 = vpop.xlane.xlu0 %287
    %v289 = vsel %vm251, 1, 0
    %v290 = vcvt.s32.f32 %v289
    %v293 = vunpack.c.l.s4 1983009808
    %v294 = vunpack.c.0.s8 %v293
    %v295 = vlaneseq
    %v296 = vshrl.u32 %v295, 7
    %v297 = vsub.s32 %v294, %v296
    %v298 = vrot.slane %v290, %v297
    %v299 = vcombine.high %v298, %v298
    %v302 = vsel %vm74, %v298, 0.0
    %v303 = vsel %vm74, %v299, 0.0
    %v304 = vadd.f32 %v302, %v303
    %305 = vadd.xlane.f32.xlu0 %v304
    %v306 = vpop.xlane.xlu0 %305
    %v307 = vadd.f32 %v270, 0.001
    %v308 = vadd.f32 %v288, %v306
    %v309 = vsub.f32 %v308, %v270
    %v310 = vadd.f32 %v309, 0.001
    %v311 = vrcp.pop %v310
    %v312 = vmul.f32 %v307, %v311
    %v313 = vadd.f32 %v249, %v312
    %v314 = vmul.f32 %v313, 0.25
    %vm315 = vcmask 1024
    %316 = vst.msk [vmem:[%s2] sm:$0x3] %vm315, %v314
    // Predicated region
    $region18: #{tpu_custom_call.1} parent=1 // pred_check
      _
    $region19: #{tpu_custom_call.1} parent=1 // pred_check_branch
      %318 = sbr.rel (0) target = $region21
    $region20: #{tpu_custom_call.1} parent=1 // pred_region
      _
    $region21: #{tpu_custom_call.1} parent=1 // pred_fallthru
      _
    // Predicated region
    $region22: #{tpu_custom_call.1} parent=1 // pred_check
      _
    $region23: #{tpu_custom_call.1} parent=1 // pred_check_branch
      %320 = sbr.rel (0) target = $region25
    $region24: #{tpu_custom_call.1} parent=1 // pred_region
      _
    $region25: #{tpu_custom_call.1} parent=1 // pred_fallthru
      _
    %321 = vsyncpa [#allocation3], 1
    %322 = vsyncpa [#allocation5], 1

</llo_original>
